<compile_context>
chip_gen: v7x
topology: tpu7x:2x2x1
jax: 0.10.0
libtpu: 0.0.40
codegen_flags: <defaults>
</compile_context>

<pallas_src>
import functools

import jax
import jax.numpy as jnp
from jax.experimental import pallas as pl
from jax.experimental.pallas import tpu as pltpu

_LANE = 128


def _round_up(x: int, m: int) -> int:
    return ((x + m - 1) // m) * m


def _conv1d_kernel(xm_ref, xh_ref, w_ref, b_ref, o_ref, *, kernel_size, precision):
    """out^T tile = W2 @ im2col(x^T window) + bias.

    xm_ref : (C_in, T)        lanes [i*T, i*T+T) of the left-padded x^T
    xh_ref : (C_in, 128)      right halo, lanes [(i+1)*T, (i+1)*T+128)
    w_ref  : (C_out, K*C_in)  VMEM-resident across the whole grid
    b_ref  : (C_out, 1)
    o_ref  : (C_out, T)       lane-dense output tile (T is a multiple of 128)
    """
    t = o_ref.shape[-1]
    if kernel_size == 1:
        rhs = xm_ref[...]                                   # conv1 == linear
    else:
        # (C_in, T+128) window; its K lane-shifted slices stacked along
        # sublanes form the (K*C_in, T) im2col RHS that the single MXU matmul
        # consumes (this buffer has to exist for the fused contraction anyway).
        x_win = jnp.concatenate([xm_ref[...], xh_ref[...]], axis=1)
        taps = [jax.lax.slice_in_dim(x_win, k, k + t, axis=1)
                for k in range(kernel_size)]
        rhs = jnp.concatenate(taps, axis=0)                 # (K*C_in, T)
    acc = jnp.dot(w_ref[...], rhs,
                  preferred_element_type=jnp.float32, precision=precision)
    o_ref[...] = (acc + b_ref[...]).astype(o_ref.dtype)


def simple_conv(x, weight, bias, kernel_size: int, *, tile_l: int = 8192,
                precision=None, compute_dtype=None):
    """'Same' 1-D convolution matching PyTorch SimpleConv.forward.

    x: (L, C_in); weight: (C_out, C_in, K) (PyTorch Conv1d layout); bias: (C_out,).
    Returns (L, C_out).
    """
    L, c_in = x.shape
    c_out = weight.shape[0]
    assert weight.shape == (c_out, c_in, kernel_size)
    assert 1 <= kernel_size <= _LANE, "128-lane halo block must cover K-1 taps"

    # Sequence tile (lane) size: multiple of 128; >=2 tiles for mid-size L so
    # v7x's two TensorCores both get work; capped by tile_l for VMEM.
    tile_l = _round_up(max(tile_l, _LANE), _LANE)
    if L <= _LANE:
        t = _LANE
    else:
        t = min(tile_l, _round_up(pl.cdiv(L, 2), _LANE))
    num_tiles = pl.cdiv(L, t)
    bpt = t // _LANE                     # halo blocks (128 lanes) per main tile

    pad_left = kernel_size // 2
    w_padded = num_tiles * t + _LANE     # last tile's halo block stays in bounds
    # Single fused HBM pass: transpose to the lane-dense (C_in, L) layout and
    # fold in both the "same" zero padding and the tile-alignment padding.
    # TODO(synk): this one pass could also be removed by DMA-ing (t, C_in)
    # strips from raw HBM and transposing on-chip, at the cost of lane-sparse
    # staging tiles; not worth it at these channel counts.
    xt = jnp.pad(x.T, ((0, 0), (pad_left, w_padded - L - pad_left)))
    w2 = jnp.transpose(weight, (0, 2, 1)).reshape(c_out, kernel_size * c_in)
    b2 = bias.reshape(c_out, 1).astype(jnp.float32)
    if compute_dtype is not None:        # optional bf16 operand path
        xt = xt.astype(compute_dtype)
        w2 = w2.astype(compute_dtype)

    kernel = functools.partial(_conv1d_kernel, kernel_size=kernel_size,
                               precision=precision)
    out_t = pl.pallas_call(
        kernel,
        grid=(num_tiles,),
        in_specs=[
            # Main tile: lanes [i*t, i*t + t).
            pl.BlockSpec((c_in, t), lambda i: (0, i)),
            # Right halo: next 128 lanes, [(i+1)*t, (i+1)*t + 128).
            pl.BlockSpec((c_in, _LANE), lambda i: (0, (i + 1) * bpt)),
            # Weights / bias: constant block index -> VMEM-resident across grid.
            pl.BlockSpec((c_out, kernel_size * c_in), lambda i: (0, 0)),
            pl.BlockSpec((c_out, 1), lambda i: (0, 0)),
        ],
        out_specs=pl.BlockSpec((c_out, t), lambda i: (0, i)),
        out_shape=jax.ShapeDtypeStruct((c_out, num_tiles * t), x.dtype),
        compiler_params=pltpu.CompilerParams(
            dimension_semantics=("parallel",),   # disjoint tiles -> both TCs on v7x
        ),
    )(xt, xt, w2, b2)
    # Layout plumbing back to the module's (L, C_out): fused slice + transpose.
    return out_t[:, :L].T


def _reference(x, weight, bias, kernel_size):
    # Plain-JAX reference mirroring the PyTorch forward exactly.
    pad_l = kernel_size // 2
    pad_r = (kernel_size - 1) // 2
    x_pad = jnp.pad(x, ((pad_l, pad_r), (0, 0)))
    L = x.shape[0]
    w = jnp.transpose(weight, (2, 1, 0))  # (K, C_in, C_out)
    out = bias[None, :].astype(jnp.float32)
    for k in range(kernel_size):
        out = out + jnp.dot(x_pad[k:k + L, :], w[k],
                            preferred_element_type=jnp.float32)
    return out.astype(x.dtype)


if __name__ == "__main__":
    keys = jax.random.split(jax.random.PRNGKey(0), 9)

    # Case 1: the module's nominal small shape (single tile, odd K).
    L1, ci1, co1, K1 = 8, 4, 8, 3
    x1 = jax.random.normal(keys[0], (L1, ci1), jnp.float32)
    w1 = jax.random.normal(keys[1], (co1, ci1, K1), jnp.float32) * 0.1
    b1 = jax.random.normal(keys[2], (co1,), jnp.float32) * 0.1
    o1 = jax.block_until_ready(simple_conv(x1, w1, b1, K1))
    assert o1.shape == (L1, co1)
    assert jnp.allclose(o1, _reference(x1, w1, b1, K1), atol=1e-4, rtol=1e-4)

    # Case 2: multi-tile grid (halo across tile boundaries), even K, ragged L.
    L2, ci2, co2, K2 = 300, 8, 16, 4
    x2 = jax.random.normal(keys[3], (L2, ci2), jnp.float32)
    w2 = jax.random.normal(keys[4], (co2, ci2, K2), jnp.float32) * 0.1
    b2 = jax.random.normal(keys[5], (co2,), jnp.float32) * 0.1
    o2 = jax.block_until_ready(simple_conv(x2, w2, b2, K2, tile_l=128))
    assert o2.shape == (L2, co2)
    assert jnp.allclose(o2, _reference(x2, w2, b2, K2), atol=1e-4, rtol=1e-4)

    # Case 3: kernel_size=1 is a linear layer (Property 1 of the module).
    L3, ci3, co3 = 16, 4, 8
    x3 = jax.random.normal(keys[6], (L3, ci3), jnp.float32)
    w3 = jax.random.normal(keys[7], (co3, ci3, 1), jnp.float32) * 0.1
    b3 = jax.random.normal(keys[8], (co3,), jnp.float32) * 0.1
    o3 = jax.block_until_ready(simple_conv(x3, w3, b3, 1))
    lin = x3 @ w3[:, :, 0].T + b3[None, :]
    assert jnp.allclose(o3, lin, atol=1e-4, rtol=1e-4)

    # Case 4: bf16 operand path (half the HBM traffic for x), looser tolerance.
    o2b = jax.block_until_ready(
        simple_conv(x2, w2, b2, K2, tile_l=128, compute_dtype=jnp.bfloat16))
    assert jnp.allclose(o2b, _reference(x2, w2, b2, K2), atol=5e-2, rtol=5e-2)

    print("KERNEL_OK")
</pallas_src>

<mosaic_0001>
module attributes {stable_mosaic.version = 11 : i64} {
  func.func @_conv1d_kernel(%arg0: i32, %arg1: memref<4x128xf32, #tpu.memory_space<vmem>>, %arg2: memref<4x128xf32, #tpu.memory_space<vmem>>, %arg3: memref<8x12xf32, #tpu.memory_space<vmem>>, %arg4: memref<8x1xf32, #tpu.memory_space<vmem>>, %arg5: memref<8x128xf32, #tpu.memory_space<vmem>>) attributes {dimension_semantics = [#tpu.dimension_semantics<parallel>], iteration_bounds = array<i64: 1>, scalar_prefetch = 0 : i64, scratch_operands = 0 : i64, tpu.core_type = #tpu.core_type<tc>, window_params = [{transform_indices = @transform_0, window_bounds = array<i64: 4, 128>}, {transform_indices = @transform_1, window_bounds = array<i64: 4, 128>}, {pipeline_mode = #tpu.pipeline_mode<synchronous>, transform_indices = @transform_2, window_bounds = array<i64: 8, 12>}, {pipeline_mode = #tpu.pipeline_mode<synchronous>, transform_indices = @transform_3, window_bounds = array<i64: 8, 1>}, {transform_indices = @transform_4, window_bounds = array<i64: 8, 128>}]} {
    %c0 = arith.constant 0 : index
    %c0_0 = arith.constant 0 : index
    %0 = vector.load %arg1[%c0, %c0_0] : memref<4x128xf32, #tpu.memory_space<vmem>>, vector<4x128xf32>
    %c0_1 = arith.constant 0 : index
    %c0_2 = arith.constant 0 : index
    %1 = vector.load %arg2[%c0_1, %c0_2] : memref<4x128xf32, #tpu.memory_space<vmem>>, vector<4x128xf32>
    %2 = tpu.concatenate %0, %1 in 1 : vector<4x128xf32>, vector<4x128xf32> -> vector<4x256xf32>
    %3 = vector.extract_strided_slice %2 {offsets = [0, 0], sizes = [4, 128], strides = [1, 1]} : vector<4x256xf32> to vector<4x128xf32>
    %4 = vector.extract_strided_slice %2 {offsets = [0, 1], sizes = [4, 128], strides = [1, 1]} : vector<4x256xf32> to vector<4x128xf32>
    %5 = vector.extract_strided_slice %2 {offsets = [0, 2], sizes = [4, 128], strides = [1, 1]} : vector<4x256xf32> to vector<4x128xf32>
    %6 = tpu.concatenate %3, %4, %5 in 0 : vector<4x128xf32>, vector<4x128xf32>, vector<4x128xf32> -> vector<12x128xf32>
    %c0_3 = arith.constant 0 : index
    %c0_4 = arith.constant 0 : index
    %7 = vector.load %arg3[%c0_3, %c0_4] : memref<8x12xf32, #tpu.memory_space<vmem>>, vector<8x12xf32>
    %cst = arith.constant dense<0.000000e+00> : vector<8x128xf32>
    %8 = tpu.matmul %7, %6, %cst {dimension_numbers = #tpu.dot_dimension_numbers<[1], [0], [0], [1], [0, 0, 1, 1], [], []>} : vector<8x12xf32>, vector<12x128xf32>, vector<8x128xf32> -> vector<8x128xf32>
    %c0_5 = arith.constant 0 : index
    %c0_6 = arith.constant 0 : index
    %9 = vector.load %arg4[%c0_5, %c0_6] : memref<8x1xf32, #tpu.memory_space<vmem>>, vector<8x1xf32>
    %10 = vector.broadcast %9 : vector<8x1xf32> to vector<8x128xf32>
    %11 = arith.addf %8, %10 : vector<8x128xf32>
    %c0_7 = arith.constant 0 : index
    %c0_8 = arith.constant 0 : index
    %12 = vector.load %arg5[%c0_7, %c0_8] : memref<8x128xf32, #tpu.memory_space<vmem>>, vector<8x128xf32>
    tpu.vector_store %arg5[%c0_7, %c0_8], %11 {strides = array<i32>} : memref<8x128xf32, #tpu.memory_space<vmem>>, vector<8x128xf32>,
    return
  }
  func.func @transform_0(%arg0: i32) -> (i32, i32) {
    %c0_i32 = arith.constant 0 : i32
    %c0_i32_0 = arith.constant 0 : i32
    return %c0_i32, %arg0 : i32, i32
  }
  func.func @transform_1(%arg0: i32) -> (i32, i32) {
    %c1_i32 = arith.constant 1 : i32
    %0 = arith.addi %arg0, %c1_i32 : i32
    %c1_i32_0 = arith.constant 1 : i32
    %1 = arith.muli %0, %c1_i32_0 : i32
    %c0_i32 = arith.constant 0 : i32
    %c0_i32_1 = arith.constant 0 : i32
    return %c0_i32, %1 : i32, i32
  }
  func.func @transform_2(%arg0: i32) -> (i32, i32) {
    %c0_i32 = arith.constant 0 : i32
    %c0_i32_0 = arith.constant 0 : i32
    %c0_i32_1 = arith.constant 0 : i32
    return %c0_i32, %c0_i32_0 : i32, i32
  }
  func.func @transform_3(%arg0: i32) -> (i32, i32) {
    %c0_i32 = arith.constant 0 : i32
    %c0_i32_0 = arith.constant 0 : i32
    %c0_i32_1 = arith.constant 0 : i32
    return %c0_i32, %c0_i32_0 : i32, i32
  }
  func.func @transform_4(%arg0: i32) -> (i32, i32) {
    %c0_i32 = arith.constant 0 : i32
    %c0_i32_0 = arith.constant 0 : i32
    return %c0_i32, %arg0 : i32, i32
  }
}

</mosaic_0001>

<llo_original>
// kernel: tpu_custom_call.1
$region0: #{tpu_custom_call.1}
  #allocation0 [shape = 'u32[]', space=smem, size = 0x4, offset = 0x4, fixed_abs, tag = 'smem constant byte address 0x4 - core index']
  #allocation1 [shape = 'u32[144,128]{1,0:T(1,128)}', space=vmem, size = 0x12000, scoped, tag = 'internal scratch']
  %s0 = inlined_call_operand.vmem [shape: f32[4,256], index: 0, kind: input, shape index: {}]
  %s1 = inlined_call_operand.hbm [shape: f32[4,256], index: 1, kind: input, shape index: {}]
  %s2 = inlined_call_operand.vmem [shape: f32[8,12], index: 2, kind: input, shape index: {}]
  %s3 = inlined_call_operand.vmem [shape: f32[8,1], index: 3, kind: input, shape index: {}]
  %s4 = inlined_call_operand.hbm [shape: f32[8,128], index: 4, kind: output, shape index: {}]
  %s5 = sld [smem:[#allocation0]]
  $region30: #{tpu_custom_call.1} parent=0
    _
  %s7 = ssub.s32 1, %s5
  %s8 = scalar_select 0, %s7, %s5
  $region1: #{tpu_custom_call.1} parent=0
    #allocation2 [shape = 'u8[2048]{0}', space=vmem, size = 0x800, scoped, tag = 'input window, operand 1, single buffered']
    #allocation3 [shape = 's32[1]{0}', space=sflag, size = 0x4, scoped, tag = 'scoped memory for tpu_custom_call.1']
    #allocation4 [shape = 's32[1]{0}', space=sflag, size = 0x4, scoped, tag = 'scoped memory for tpu_custom_call.1']
    #allocation5 [shape = 'u8[4096]{0}', space=vmem, size = 0x1000, scoped, tag = 'output window, operand 0, single buffered']
    %9 = vsyncpa [#allocation3], 0
    %10 = vsyncpa [#allocation4], 0
    // Predicated region
    $region2: #{tpu_custom_call.1} parent=1 // pred_check
      _
    $region3: #{tpu_custom_call.1} parent=1 // pred_check_branch
      %12 = sbr.rel (0) target = $region5
    $region4: #{tpu_custom_call.1} parent=1 // pred_region
      _
    $region5: #{tpu_custom_call.1} parent=1 // pred_fallthru
      _
    // Predicated region
    $region6: #{tpu_custom_call.1} parent=1 // pred_check
      _
    $region7: #{tpu_custom_call.1} parent=1 // pred_check_branch
      %14 = sbr.rel (0) target = $region9
    $region8: #{tpu_custom_call.1} parent=1 // pred_region
      %s15 = sadd.s32 0, 1
      %s17 = ssub.s32 64, 64
      %18 = vsyncadd [#allocation3], %s17
      %s19 = smul.addr %s15, 64
      %s20 = scalar_lea.hbm %s1, %s19
      %s22 = sshll.u32 [#allocation2], 4
      %s23 = int_to_ptr.vmem [resolvable:$true] %s22
      %25 = dma.hbm_to_vmem [thread:$0]  %s20, 64, %s23, [#allocation3]
    $region9: #{tpu_custom_call.1} parent=1 // pred_fallthru
      _
    // Predicated region
    $region10: #{tpu_custom_call.1} parent=1 // pred_check
      _
    $region11: #{tpu_custom_call.1} parent=1 // pred_check_branch
      %27 = sbr.rel (0) target = $region13
    $region12: #{tpu_custom_call.1} parent=1 // pred_region
      _
    $region13: #{tpu_custom_call.1} parent=1 // pred_fallthru
      _
    // Predicated region
    $region14: #{tpu_custom_call.1} parent=1 // pred_check
      _
    $region15: #{tpu_custom_call.1} parent=1 // pred_check_branch
      %29 = sbr.rel (0) target = $region17
    $region16: #{tpu_custom_call.1} parent=1 // pred_region
      _
    $region17: #{tpu_custom_call.1} parent=1 // pred_fallthru
      _
    // Predicated region
    $region18: #{tpu_custom_call.1} parent=1 // pred_check
      _
    $region19: #{tpu_custom_call.1} parent=1 // pred_check_branch
      %31 = sbr.rel (0) target = $region21
    $region20: #{tpu_custom_call.1} parent=1 // pred_region
      %32 = dma.done [#allocation3], 64
    $region21: #{tpu_custom_call.1} parent=1 // pred_fallthru
      _
    %s33 = sadd.s32 0, 1
    %v34 = vld [vmem:[%s0] sm:$0xf]
    %v35 = vld [vmem:[#allocation2] sm:$0xf]
    %v38 = vrot.slane %v34, 4
    %v39 = vrot.slane %v35, 4
    %40 = vrot.lane.b32.xlu0 %v38, 127
    %v41 = vpop.permute.xlu0 %40
    %42 = vrot.lane.b32.xlu0 %v39, 127
    %v43 = vpop.permute.xlu0 %42
    %vm44 = vcmask 1039360
    %v45 = vsel %vm44, %v41, %v43
    %47 = vrot.lane.b32.xlu0 %v34, 126
    %v48 = vpop.permute.xlu0 %47
    %49 = vrot.lane.b32.xlu0 %v35, 126
    %v50 = vpop.permute.xlu0 %49
    %vm51 = vcmask 1031168
    %v52 = vsel %vm51, %v48, %v50
    %vm53 = vcmask 1043456
    %v54 = vsel %vm53, %v34, %v45
    %v55 = vld [vmem:[%s2] sm:$0xff]
    %v56 = vld [vmem:[%s3] sm:$0xff]
    %58 = vset.pattern.permute.xlu0 0
    %59 = vperm.xlu0 %58, %v56
    %v60 = vpop.permute.xlu0 %59
    %vm62 = vcmask 97280
    %v64 = vsel %vm62, %v55, 0
    %v66 = vsel %vm53, %v52, 0
    %68 = vmatprep.subr.mxu0 0.0
    %69 = vmatpush1.msra.mxu0 %v54
    %70 = vmatprep.subr.mxu0 0.0
    %71 = vmatpush1.msra.mxu0 %v66
    %72 = vmatprep.subr.mxu0 0.0
    %73 = vmatpush1.msra.mxu0 0.0
    %74 = vmatprep.subr.mxu0 0.0
    %75 = vmatpush1.msra.mxu0 0.0
    %76 = vmatprep.subr.mxu0 0.0
    %77 = vmatpush1.msra.mxu0 0.0
    %78 = vmatprep.subr.mxu0 0.0
    %79 = vmatpush1.msra.mxu0 0.0
    %80 = vmatprep.subr.mxu0 0.0
    %81 = vmatpush1.msra.mxu0 0.0
    %82 = vmatprep.subr.mxu0 0.0
    %83 = vmatpush1.msra.mxu0 0.0
    %84 = vmatprep.subr.mxu0 0.0
    %85 = vmatpush1.msra.mxu0 0.0
    %86 = vmatprep.subr.mxu0 0.0
    %87 = vmatpush1.msra.mxu0 0.0
    %88 = vmatprep.subr.mxu0 0.0
    %89 = vmatpush1.msra.mxu0 0.0
    %90 = vmatprep.subr.mxu0 0.0
    %91 = vmatpush1.msra.mxu0 0.0
    %92 = vmatprep.subr.mxu0 0.0
    %93 = vmatpush1.msra.mxu0 0.0
    %94 = vmatprep.subr.mxu0 0.0
    %95 = vmatpush1.msra.mxu0 0.0
    %96 = vmatprep.subr.mxu0 0.0
    %97 = vmatpush1.msra.mxu0 0.0
    %98 = vmatprep.subr.mxu0 0.0
    %99 = vmatpush1.msra.mxu0 0.0
    %100 = vmatprep.subr.mxu0 0.0
    %101 = vmatpush1.msra.mxu0 0.0
    %102 = vmatprep.subr.mxu0 0.0
    %103 = vmatpush1.msra.mxu0 0.0
    %104 = vmatprep.subr.mxu0 0.0
    %105 = vmatpush1.msra.mxu0 0.0
    %106 = vmatprep.subr.mxu0 0.0
    %107 = vmatpush1.msra.mxu0 0.0
    %108 = vmatprep.subr.mxu0 0.0
    %109 = vmatpush1.msra.mxu0 0.0
    %110 = vmatprep.subr.mxu0 0.0
    %111 = vmatpush1.msra.mxu0 0.0
    %112 = vmatprep.subr.mxu0 0.0
    %113 = vmatpush1.msra.mxu0 0.0
    %114 = vmatprep.subr.mxu0 0.0
    %115 = vmatpush1.msra.mxu0 0.0
    %116 = vmatprep.subr.mxu0 0.0
    %117 = vmatpush1.msra.mxu0 0.0
    %118 = vmatprep.subr.mxu0 0.0
    %119 = vmatpush1.msra.mxu0 0.0
    %120 = vmatprep.subr.mxu0 0.0
    %121 = vmatpush1.msra.mxu0 0.0
    %122 = vmatprep.subr.mxu0 0.0
    %123 = vmatpush1.msra.mxu0 0.0
    %124 = vmatprep.subr.mxu0 0.0
    %125 = vmatpush1.msra.mxu0 0.0
    %126 = vmatprep.subr.mxu0 0.0
    %127 = vmatpush1.msra.mxu0 0.0
    %128 = vmatprep.subr.mxu0 0.0
    %129 = vmatpush1.msra.mxu0 0.0
    %130 = vmatprep.subr.mxu0 0.0
    %131 = vmatpush1.msra.mxu0 0.0
    %132 = vmatprep.mubr.f32.mxu0 0.0
    %133 = vmatmul.mubr.f32.gmra.mrb[0].mxu0 %v64
    %v134 = vpop.f32.mrb[0].mxu0
    %v135 = vadd.f32 %v60, %v134
    %v136 = vpop.f32.mrb[0].mxu0
    %137 = vdwg.mxu0
    %138 = vst [vmem:[#allocation5] sm:$0xff] %v135
    // Predicated region
    $region22: #{tpu_custom_call.1} parent=1 // pred_check
      _
    $region23: #{tpu_custom_call.1} parent=1 // pred_check_branch
      %140 = sbr.rel (0) target = $region25
    $region24: #{tpu_custom_call.1} parent=1 // pred_region
      %s142 = ssub.s32 128, 128
      %143 = vsyncadd [#allocation4], %s142
      %s145 = sshll.u32 [#allocation5], 4
      %s146 = int_to_ptr.vmem [resolvable:$true] %s145
      %148 = dma.vmem_to_hbm [thread:$0]  %s146, 128, %s4, [#allocation4]
    $region25: #{tpu_custom_call.1} parent=1 // pred_fallthru
      _
    // Predicated region
    $region26: #{tpu_custom_call.1} parent=1 // pred_check
      _
    $region27: #{tpu_custom_call.1} parent=1 // pred_check_branch
      %150 = sbr.rel (0) target = $region29
    $region28: #{tpu_custom_call.1} parent=1 // pred_region
      %151 = dma.done [#allocation4], 128
    $region29: #{tpu_custom_call.1} parent=1 // pred_fallthru
      _
    %152 = vsyncpa [#allocation3], 1
    %153 = vsyncpa [#allocation4], 1

</llo_original>
